<compile_context>
chip_gen: v6e
topology: v6e:2x2x1
jax: 0.10.0
libtpu: 0.0.40
codegen_flags: <defaults>
</compile_context>

<pallas_src>
import jax
import jax.numpy as jnp
from jax.experimental import pallas as pl
from jax.experimental.pallas import tpu as pltpu


def _round_up(x: int, m: int) -> int:
    return ((x + m - 1) // m) * m


def _pick_tile(padded: int, max_tile: int, align: int) -> int:
    """Largest multiple of `align` that divides `padded` and is <= max_tile."""
    t = min(max_tile, padded)
    t = max((t // align) * align, align)
    while padded % t != 0:
        t -= align
    return t


# --------------------------------------------------------------------------- #
# Kernels
# --------------------------------------------------------------------------- #
def _cell_kernel_acc(xh_ref, w_ref, b_ref, out_ref, acc_ref):
    """out = xh @ W + b, tiled over (B, N, K) with an f32 VMEM accumulator."""

    @pl.when(pl.program_id(2) == 0)
    def _init():
        acc_ref[...] = jnp.zeros_like(acc_ref)

    acc_ref[...] += jnp.dot(
        xh_ref[...], w_ref[...], preferred_element_type=jnp.float32
    )

    @pl.when(pl.program_id(2) == pl.num_programs(2) - 1)
    def _finalize():
        out_ref[...] = (acc_ref[...] + b_ref[...]).astype(out_ref.dtype)


def _cell_kernel_single_k(xh_ref, w_ref, b_ref, out_ref):
    """Fast path when the whole K dim fits in one tile: no accumulator RMW."""
    out_ref[...] = (
        jnp.dot(xh_ref[...], w_ref[...], preferred_element_type=jnp.float32)
        + b_ref[...]
    ).astype(out_ref.dtype)


# --------------------------------------------------------------------------- #
# Step-invariant weight preparation (do ONCE, reuse every timestep)
# --------------------------------------------------------------------------- #
def prepare_linear_rnn_weights(
    weight_ih, weight_hh, bias_ih=None, bias_hh=None, *, compute_dtype=None
):
    """Fuse + pad weights once: W = [W_ih^T ; W_hh^T] -> (Kp, Hp), bias -> (1, Hp) f32."""
    H, I = weight_ih.shape
    assert weight_hh.shape == (H, H)
    K = I + H
    Kp = _round_up(K, 128)
    Hp = _round_up(H, 128)

    wdtype = compute_dtype if compute_dtype is not None else weight_ih.dtype
    w = jnp.concatenate(
        [weight_ih.T.astype(wdtype), weight_hh.T.astype(wdtype)], axis=0
    )
    w_p = jnp.pad(w, ((0, Kp - K), (0, Hp - H)))

    bias = jnp.zeros((H,), jnp.float32)
    if bias_ih is not None:
        bias = bias + bias_ih.astype(jnp.float32)
    if bias_hh is not None:
        bias = bias + bias_hh.astype(jnp.float32)
    b_p = jnp.pad(bias, (0, Hp - H)).reshape(1, Hp)

    return {
        "w_p": w_p,
        "b_p": b_p,
        "input_size": I,
        "hidden_size": H,
        "K": K,
        "Kp": Kp,
        "Hp": Hp,
    }


# --------------------------------------------------------------------------- #
# Per-step forward (uses prepared weights)
# --------------------------------------------------------------------------- #
def linear_rnn_cell_step(
    x,
    hx,
    prepared,
    *,
    block_b: int = 256,
    block_n: int = 512,
    block_k: int = 1024,
    out_dtype=None,
):
    """x: (B, I), hx: (B, H) or None.  Returns (B, H) next hidden state."""
    B, I = x.shape
    H = prepared["hidden_size"]
    assert I == prepared["input_size"]
    K, Kp, Hp = prepared["K"], prepared["Kp"], prepared["Hp"]
    w_p, b_p = prepared["w_p"], prepared["b_p"]
    cdtype = w_p.dtype
    out_dtype = out_dtype if out_dtype is not None else x.dtype

    if hx is None:
        hx = jnp.zeros((B, H), x.dtype)

    # Per-step activation plumbing only (weights were prepared once).
    Bp = _round_up(B, 8)
    xh = jnp.concatenate([x.astype(cdtype), hx.astype(cdtype)], axis=1)
    xh_p = jnp.pad(xh, ((0, Bp - B), (0, Kp - K)))

    # Tiles divide the 128-padded dims exactly (no tile-sized over-padding).
    tb = _pick_tile(Bp, block_b, 8)
    tn = _pick_tile(Hp, block_n, 128)
    tk = _pick_tile(Kp, block_k, 128)

    # v7x megacore: keep >=2 iterations on a parallel axis when the shape allows
    # so both TensorCores get work.
    if Bp // tb == 1 and Hp // tn == 1 and Hp >= 256:
        tn = _pick_tile(Hp, Hp // 2, 128)

    grid_b, grid_n, grid_k = Bp // tb, Hp // tn, Kp // tk

    # Raise scoped VMEM (v5e default is only 16 MiB); footprint here is small,
    # so 32 MiB is ample and safe on every generation (v7x physical = 64 MiB).
    itemsize = jnp.dtype(cdtype).itemsize
    vmem_est = (
        2 * (tb * tk + tk * tn + tn) * itemsize          # double-buffered inputs
        + 2 * tb * tn * jnp.dtype(out_dtype).itemsize    # double-buffered output
        + tb * tn * 4                                    # f32 accumulator
    )
    vmem_limit = int(min(max(2 * vmem_est, 32 << 20), 48 << 20))

    if grid_k == 1:
        out_p = pl.pallas_call(
            _cell_kernel_single_k,
            out_shape=jax.ShapeDtypeStruct((Bp, Hp), out_dtype),
            grid_spec=pltpu.PrefetchScalarGridSpec(
                num_scalar_prefetch=0,
                grid=(grid_b, grid_n),
                in_specs=[
                    pl.BlockSpec((tb, tk), lambda i, j: (i, 0)),   # xh tile
                    pl.BlockSpec((tk, tn), lambda i, j: (0, j)),   # fused weight tile
                    pl.BlockSpec((1, tn), lambda i, j: (0, j)),    # folded bias row
                ],
                out_specs=pl.BlockSpec((tb, tn), lambda i, j: (i, j)),
            ),
            compiler_params=pltpu.CompilerParams(
                dimension_semantics=("parallel", "parallel"),
                vmem_limit_bytes=vmem_limit,
            ),
        )(xh_p, w_p, b_p)
    else:
        out_p = pl.pallas_call(
            _cell_kernel_acc,
            out_shape=jax.ShapeDtypeStruct((Bp, Hp), out_dtype),
            grid_spec=pltpu.PrefetchScalarGridSpec(
                num_scalar_prefetch=0,
                grid=(grid_b, grid_n, grid_k),
                in_specs=[
                    pl.BlockSpec((tb, tk), lambda i, j, k: (i, k)),
                    pl.BlockSpec((tk, tn), lambda i, j, k: (k, j)),
                    pl.BlockSpec((1, tn), lambda i, j, k: (0, j)),
                ],
                out_specs=pl.BlockSpec((tb, tn), lambda i, j, k: (i, j)),
                scratch_shapes=[pltpu.VMEM((tb, tn), jnp.float32)],
            ),
            compiler_params=pltpu.CompilerParams(
                dimension_semantics=("parallel", "parallel", "arbitrary"),
                vmem_limit_bytes=vmem_limit,
            ),
        )(xh_p, w_p, b_p)

    # Strip the lane/batch padding back to the logical shape.
    return out_p[:B, :H]


# --------------------------------------------------------------------------- #
# Convenience wrapper matching the PyTorch forward signature
# --------------------------------------------------------------------------- #
def linear_rnn_cell(
    x,
    hx,
    weight_ih,
    weight_hh,
    bias_ih=None,
    bias_hh=None,
    *,
    use_pallas=None,
    compute_dtype=None,
    **tile_kwargs,
):
    B, I = x.shape
    H = weight_hh.shape[0]
    Hp = _round_up(H, 128)
    Kp = _round_up(I + H, 128)

    if use_pallas is None:
        # Tiny-shape fallback: 128-lane padding + launch overhead dominate.
        use_pallas = (Hp >= 256) and (Kp >= 256)

    if not use_pallas:
        if hx is None:
            hx = jnp.zeros((B, H), x.dtype)
        out = x @ weight_ih.T.astype(x.dtype) + hx.astype(x.dtype) @ weight_hh.T.astype(x.dtype)
        if bias_ih is not None:
            out = out + bias_ih.astype(out.dtype)
        if bias_hh is not None:
            out = out + bias_hh.astype(out.dtype)
        return out

    prepared = prepare_linear_rnn_weights(
        weight_ih, weight_hh, bias_ih, bias_hh, compute_dtype=compute_dtype
    )
    return linear_rnn_cell_step(x, hx, prepared, **tile_kwargs)


def xavier_uniform(key, shape, dtype=jnp.float32):
    fan_out, fan_in = shape
    limit = jnp.sqrt(6.0 / (fan_in + fan_out))
    return jax.random.uniform(key, shape, dtype, minval=-limit, maxval=limit)


if __name__ == "__main__":
    # --- small demo shapes consistent with the module ------------------------
    input_size = 16
    hidden_size = 32
    batch = 8

    key = jax.random.PRNGKey(0)
    k_wih, k_whh, k_x, k_h = jax.random.split(key, 4)

    # Deterministic parameter init matching nn.init.xavier_uniform_ / zeros_.
    weight_ih = xavier_uniform(k_wih, (hidden_size, input_size))
    weight_hh = xavier_uniform(k_whh, (hidden_size, hidden_size))
    bias_ih = jnp.zeros((hidden_size,), jnp.float32)
    bias_hh = jnp.zeros((hidden_size,), jnp.float32)

    x = jax.random.normal(k_x, (batch, input_size), jnp.float32)
    hx = jax.random.normal(k_h, (batch, hidden_size), jnp.float32)

    # Step-invariant weight prep: done ONCE, reused across timesteps.
    prepared = prepare_linear_rnn_weights(weight_ih, weight_hh, bias_ih, bias_hh)

    # Run the Pallas kernel (single-K fast-path variant at these shapes).
    out = jax.block_until_ready(linear_rnn_cell_step(x, hx, prepared))
    ref = x @ weight_ih.T + bias_ih + hx @ weight_hh.T + bias_hh
    assert out.shape == (batch, hidden_size)
    assert jnp.allclose(out, ref, atol=1e-5, rtol=1e-5)

    # hx = None case: zero initial hidden state.
    out0 = jax.block_until_ready(linear_rnn_cell_step(x, None, prepared))
    ref0 = x @ weight_ih.T + bias_ih + bias_hh
    assert out0.shape == (batch, hidden_size)
    assert jnp.allclose(out0, ref0, atol=1e-5, rtol=1e-5)

    # A larger shape that exercises the multi-K accumulator kernel variant.
    I2, H2, B2 = 512, 640, 16
    kw1, kw2, kx2, kh2 = jax.random.split(jax.random.PRNGKey(1), 4)
    wih2 = xavier_uniform(kw1, (H2, I2))
    whh2 = xavier_uniform(kw2, (H2, H2))
    x2 = jax.random.normal(kx2, (B2, I2), jnp.float32)
    h2 = jax.random.normal(kh2, (B2, H2), jnp.float32)
    prep2 = prepare_linear_rnn_weights(wih2, whh2, None, None)
    out2 = jax.block_until_ready(linear_rnn_cell_step(x2, h2, prep2))
    ref2 = x2 @ wih2.T + h2 @ whh2.T
    assert out2.shape == (B2, H2)
    assert jnp.allclose(out2, ref2, atol=1e-3, rtol=1e-3)

    # Convenience wrapper (auto-falls back to plain jnp at tiny shapes).
    out3 = jax.block_until_ready(
        linear_rnn_cell(x, hx, weight_ih, weight_hh, bias_ih, bias_hh)
    )
    assert jnp.allclose(out3, ref, atol=1e-5, rtol=1e-5)

    print("KERNEL_OK")
</pallas_src>

<mosaic_0001>
module attributes {stable_mosaic.version = 11 : i64} {
  func.func @_cell_kernel_single_k(%arg0: i32, %arg1: i32, %arg2: memref<8x128xf32, #tpu.memory_space<vmem>>, %arg3: memref<128x128xf32, #tpu.memory_space<vmem>>, %arg4: memref<1x128xf32, #tpu.memory_space<vmem>>, %arg5: memref<8x128xf32, #tpu.memory_space<vmem>>) attributes {dimension_semantics = [#tpu.dimension_semantics<parallel>, #tpu.dimension_semantics<parallel>], iteration_bounds = array<i64: 1, 1>, scalar_prefetch = 0 : i64, scratch_operands = 0 : i64, tpu.core_type = #tpu.core_type<tc>, window_params = [{transform_indices = @transform_0, window_bounds = array<i64: 8, 128>}, {transform_indices = @transform_1, window_bounds = array<i64: 128, 128>}, {transform_indices = @transform_2, window_bounds = array<i64: 1, 128>}, {transform_indices = @transform_3, window_bounds = array<i64: 8, 128>}]} {
    %c0 = arith.constant 0 : index
    %c0_0 = arith.constant 0 : index
    %0 = vector.load %arg2[%c0, %c0_0] : memref<8x128xf32, #tpu.memory_space<vmem>>, vector<8x128xf32>
    %c0_1 = arith.constant 0 : index
    %c0_2 = arith.constant 0 : index
    %1 = vector.load %arg3[%c0_1, %c0_2] : memref<128x128xf32, #tpu.memory_space<vmem>>, vector<128x128xf32>
    %cst = arith.constant dense<0.000000e+00> : vector<8x128xf32>
    %2 = tpu.matmul %0, %1, %cst {dimension_numbers = #tpu.dot_dimension_numbers<[1], [0], [0], [1], [0, 0, 1, 1], [], []>} : vector<8x128xf32>, vector<128x128xf32>, vector<8x128xf32> -> vector<8x128xf32>
    %c0_3 = arith.constant 0 : index
    %c0_4 = arith.constant 0 : index
    %3 = vector.load %arg4[%c0_3, %c0_4] : memref<1x128xf32, #tpu.memory_space<vmem>>, vector<1x128xf32>
    %4 = vector.broadcast %3 : vector<1x128xf32> to vector<8x128xf32>
    %5 = arith.addf %2, %4 : vector<8x128xf32>
    %c0_5 = arith.constant 0 : index
    %c0_6 = arith.constant 0 : index
    %6 = vector.load %arg5[%c0_5, %c0_6] : memref<8x128xf32, #tpu.memory_space<vmem>>, vector<8x128xf32>
    tpu.vector_store %arg5[%c0_5, %c0_6], %5 {strides = array<i32>} : memref<8x128xf32, #tpu.memory_space<vmem>>, vector<8x128xf32>,
    return
  }
  func.func @transform_0(%arg0: i32, %arg1: i32) -> (i32, i32) {
    %c0_i32 = arith.constant 0 : i32
    %c0_i32_0 = arith.constant 0 : i32
    return %arg0, %c0_i32 : i32, i32
  }
  func.func @transform_1(%arg0: i32, %arg1: i32) -> (i32, i32) {
    %c0_i32 = arith.constant 0 : i32
    %c0_i32_0 = arith.constant 0 : i32
    return %c0_i32, %arg1 : i32, i32
  }
  func.func @transform_2(%arg0: i32, %arg1: i32) -> (i32, i32) {
    %c0_i32 = arith.constant 0 : i32
    %c0_i32_0 = arith.constant 0 : i32
    return %c0_i32, %arg1 : i32, i32
  }
  func.func @transform_3(%arg0: i32, %arg1: i32) -> (i32, i32) {
    %c0_i32 = arith.constant 0 : i32
    return %arg0, %arg1 : i32, i32
  }
}

</mosaic_0001>

<llo_original>
// kernel: tpu_custom_call.1
$region0: #{tpu_custom_call.1}
  #allocation0 [shape = 'u32[]', space=smem, size = 0x4, offset = 0x4, fixed_abs, tag = 'smem constant byte address 0x4 - core index']
  #allocation1 [shape = 'u32[144,128]{1,0:T(1,128)}', space=vmem, size = 0x12000, scoped, tag = 'internal scratch']
  %s0 = inlined_call_operand.hbm [shape: f32[8,128], index: 0, kind: input, shape index: {}]
  %s1 = inlined_call_operand.hbm [shape: f32[128,128], index: 1, kind: input, shape index: {}]
  %s2 = inlined_call_operand.vmem [shape: f32[1,128], index: 2, kind: input, shape index: {}]
  %s3 = inlined_call_operand.hbm [shape: f32[8,128], index: 3, kind: output, shape index: {}]
  %s4 = sld [smem:[#allocation0]]
  $region30: #{tpu_custom_call.1} parent=0
    _
  %s6 = ssub.s32 1, %s4
  %s7 = scalar_select 0, %s6, %s4
  $region1: #{tpu_custom_call.1} parent=0
    #allocation2 [shape = 'u8[4096]{0}', space=vmem, size = 0x1000, scoped, tag = 'input window, operand 0, single buffered']
    #allocation3 [shape = 's32[1]{0}', space=sflag, size = 0x4, scoped, tag = 'scoped memory for tpu_custom_call.1']
    #allocation4 [shape = 's32[1]{0}', space=sflag, size = 0x4, scoped, tag = 'scoped memory for tpu_custom_call.1']
    #allocation5 [shape = 'u8[65536]{0}', space=vmem, size = 0x10000, scoped, tag = 'input window, operand 1, single buffered']
    #allocation6 [shape = 's32[1]{0}', space=sflag, size = 0x4, scoped, tag = 'scoped memory for tpu_custom_call.1']
    #allocation7 [shape = 'u8[4096]{0}', space=vmem, size = 0x1000, scoped, tag = 'output window, operand 0, single buffered']
    %8 = vsyncpa [#allocation3], 0
    %9 = vsyncpa [#allocation6], 0
    %10 = vsyncpa [#allocation4], 0
    // Predicated region
    $region2: #{tpu_custom_call.1} parent=1 // pred_check
      _
    $region3: #{tpu_custom_call.1} parent=1 // pred_check_branch
      %12 = sbr.rel (0) target = $region5
    $region4: #{tpu_custom_call.1} parent=1 // pred_region
      %s14 = ssub.s32 128, 128
      %15 = vsyncadd [#allocation3], %s14
      %s17 = sshll.u32 [#allocation2], 4
      %s18 = int_to_ptr.vmem [resolvable:$true] %s17
      %20 = dma.hbm_to_vmem [thread:$0]  %s0, 128, %s18, [#allocation3]
    $region5: #{tpu_custom_call.1} parent=1 // pred_fallthru
      _
    // Predicated region
    $region6: #{tpu_custom_call.1} parent=1 // pred_check
      _
    $region7: #{tpu_custom_call.1} parent=1 // pred_check_branch
      %22 = sbr.rel (0) target = $region9
    $region8: #{tpu_custom_call.1} parent=1 // pred_region
      %s24 = ssub.s32 2048, 2048
      %25 = vsyncadd [#allocation6], %s24
      %s26 = sshll.u32 [#allocation5], 4
      %s27 = int_to_ptr.vmem [resolvable:$true] %s26
      %32 = dma.hbm_to_vmem [thread:$0]  %s1, 2048, %s27, [#allocation6], 128, 128, 8
    $region9: #{tpu_custom_call.1} parent=1 // pred_fallthru
      _
    // Predicated region
    $region10: #{tpu_custom_call.1} parent=1 // pred_check
      _
    $region11: #{tpu_custom_call.1} parent=1 // pred_check_branch
      %34 = sbr.rel (0) target = $region13
    $region12: #{tpu_custom_call.1} parent=1 // pred_region
      _
    $region13: #{tpu_custom_call.1} parent=1 // pred_fallthru
      _
    // Predicated region
    $region14: #{tpu_custom_call.1} parent=1 // pred_check
      _
    $region15: #{tpu_custom_call.1} parent=1 // pred_check_branch
      %36 = sbr.rel (0) target = $region17
    $region16: #{tpu_custom_call.1} parent=1 // pred_region
      %37 = dma.done [#allocation3], 128
    $region17: #{tpu_custom_call.1} parent=1 // pred_fallthru
      _
    // Predicated region
    $region18: #{tpu_custom_call.1} parent=1 // pred_check
      _
    $region19: #{tpu_custom_call.1} parent=1 // pred_check_branch
      %39 = sbr.rel (0) target = $region21
    $region20: #{tpu_custom_call.1} parent=1 // pred_region
      %40 = dma.done [#allocation6], 2048
    $region21: #{tpu_custom_call.1} parent=1 // pred_fallthru
      _
    %v41 = vld [vmem:[#allocation2] sm:$0xff]
    %v42 = vld [vmem:[#allocation5] sm:$0xff]
    %v43 = vld [vmem:[#allocation5 + $0x8] sm:$0xff]
    %v44 = vld [vmem:[#allocation5 + $0x10] sm:$0xff]
    %v45 = vld [vmem:[#allocation5 + $0x18] sm:$0xff]
    %v46 = vld [vmem:[#allocation5 + $0x20] sm:$0xff]
    %v47 = vld [vmem:[#allocation5 + $0x28] sm:$0xff]
    %v48 = vld [vmem:[#allocation5 + $0x30] sm:$0xff]
    %v49 = vld [vmem:[#allocation5 + $0x38] sm:$0xff]
    %v50 = vld [vmem:[#allocation5 + $0x40] sm:$0xff]
    %v51 = vld [vmem:[#allocation5 + $0x48] sm:$0xff]
    %v52 = vld [vmem:[#allocation5 + $0x50] sm:$0xff]
    %v53 = vld [vmem:[#allocation5 + $0x58] sm:$0xff]
    %v54 = vld [vmem:[#allocation5 + $0x60] sm:$0xff]
    %v55 = vld [vmem:[#allocation5 + $0x68] sm:$0xff]
    %v56 = vld [vmem:[#allocation5 + $0x70] sm:$0xff]
    %v57 = vld [vmem:[#allocation5 + $0x78] sm:$0xff]
    %v58 = vld [vmem:[%s2] sm:$0x1]
    %v60 = vlaneseq
    %v61 = vshrl.u32 %v60, 7
    %v62 = vsub.s32 0, %v61
    %v63 = vrot.slane %v58, %v62
    %65 = vmatprep.subr.mxu0 0.0
    %66 = vmatpush1.msra.mxu0 %v57
    %67 = vmatprep.subr.mxu0 0.0
    %68 = vmatpush1.msra.mxu0 %v56
    %69 = vmatprep.subr.mxu0 0.0
    %70 = vmatpush1.msra.mxu0 %v55
    %71 = vmatprep.subr.mxu0 0.0
    %72 = vmatpush1.msra.mxu0 %v54
    %73 = vmatprep.subr.mxu0 0.0
    %74 = vmatpush1.msra.mxu0 %v53
    %75 = vmatprep.subr.mxu0 0.0
    %76 = vmatpush1.msra.mxu0 %v52
    %77 = vmatprep.subr.mxu0 0.0
    %78 = vmatpush1.msra.mxu0 %v51
    %79 = vmatprep.subr.mxu0 0.0
    %80 = vmatpush1.msra.mxu0 %v50
    %81 = vmatprep.subr.mxu0 0.0
    %82 = vmatpush1.msra.mxu0 %v49
    %83 = vmatprep.subr.mxu0 0.0
    %84 = vmatpush1.msra.mxu0 %v48
    %85 = vmatprep.subr.mxu0 0.0
    %86 = vmatpush1.msra.mxu0 %v47
    %87 = vmatprep.subr.mxu0 0.0
    %88 = vmatpush1.msra.mxu0 %v46
    %89 = vmatprep.subr.mxu0 0.0
    %90 = vmatpush1.msra.mxu0 %v45
    %91 = vmatprep.subr.mxu0 0.0
    %92 = vmatpush1.msra.mxu0 %v44
    %93 = vmatprep.subr.mxu0 0.0
    %94 = vmatpush1.msra.mxu0 %v43
    %95 = vmatprep.subr.mxu0 0.0
    %96 = vmatpush1.msra.mxu0 %v42
    %97 = vmatprep.subr.mxu0 0.0
    %98 = vmatpush2.msra.mxu0 0.0
    %99 = vmatprep.subr.mxu0 0.0
    %100 = vmatpush2.msra.mxu0 0.0
    %101 = vmatprep.subr.mxu0 0.0
    %102 = vmatpush2.msra.mxu0 0.0
    %103 = vmatprep.subr.mxu0 0.0
    %104 = vmatpush2.msra.mxu0 0.0
    %105 = vmatprep.subr.mxu0 0.0
    %106 = vmatpush2.msra.mxu0 0.0
    %107 = vmatprep.subr.mxu0 0.0
    %108 = vmatpush2.msra.mxu0 0.0
    %109 = vmatprep.subr.mxu0 0.0
    %110 = vmatpush2.msra.mxu0 0.0
    %111 = vmatprep.subr.mxu0 0.0
    %112 = vmatpush2.msra.mxu0 0.0
    %113 = vmatprep.subr.mxu0 0.0
    %114 = vmatpush2.msra.mxu0 0.0
    %115 = vmatprep.subr.mxu0 0.0
    %116 = vmatpush2.msra.mxu0 0.0
    %117 = vmatprep.subr.mxu0 0.0
    %118 = vmatpush2.msra.mxu0 0.0
    %119 = vmatprep.subr.mxu0 0.0
    %120 = vmatpush2.msra.mxu0 0.0
    %121 = vmatprep.subr.mxu0 0.0
    %122 = vmatpush2.msra.mxu0 0.0
    %123 = vmatprep.subr.mxu0 0.0
    %124 = vmatpush2.msra.mxu0 0.0
    %125 = vmatprep.subr.mxu0 0.0
    %126 = vmatpush2.msra.mxu0 0.0
    %127 = vmatprep.subr.mxu0 0.0
    %128 = vmatpush2.msra.mxu0 0.0
    %129 = vmatprep.mubr.f32.mxu0 0.0
    %130 = vmatmul.mubr.f32.gmra.mxu0 %v41
    %v131 = vpop.f32.mrf.mxu0
    %v132 = vadd.f32 %v63, %v131
    %v133 = vpop.f32.mrf.mxu0
    %134 = vdwg.mxu0
    %135 = vst [vmem:[#allocation7] sm:$0xff] %v132
    // Predicated region
    $region22: #{tpu_custom_call.1} parent=1 // pred_check
      _
    $region23: #{tpu_custom_call.1} parent=1 // pred_check_branch
      %137 = sbr.rel (0) target = $region25
    $region24: #{tpu_custom_call.1} parent=1 // pred_region
      %s139 = ssub.s32 128, 128
      %140 = vsyncadd [#allocation4], %s139
      %s142 = sshll.u32 [#allocation7], 4
      %s143 = int_to_ptr.vmem [resolvable:$true] %s142
      %145 = dma.vmem_to_hbm [thread:$0]  %s143, 128, %s3, [#allocation4]
    $region25: #{tpu_custom_call.1} parent=1 // pred_fallthru
      _
    // Predicated region
    $region26: #{tpu_custom_call.1} parent=1 // pred_check
      _
    $region27: #{tpu_custom_call.1} parent=1 // pred_check_branch
      %147 = sbr.rel (0) target = $region29
    $region28: #{tpu_custom_call.1} parent=1 // pred_region
      %148 = dma.done [#allocation4], 128
    $region29: #{tpu_custom_call.1} parent=1 // pred_fallthru
      _
    %149 = vsyncpa [#allocation3], 1
    %150 = vsyncpa [#allocation6], 1
    %151 = vsyncpa [#allocation4], 1

</llo_original>
